<compile_context>
chip_gen: v5e
topology: v5e:2x2
jax: 0.10.0
libtpu: 0.0.40
codegen_flags: <defaults>
</compile_context>

<pallas_src>
import functools

import jax
import jax.numpy as jnp
from jax.experimental import pallas as pl
from jax.experimental.pallas import tpu as pltpu

_LANE = 512  # lane width of the flattened slab (multiple of 128)


def _smape_kernel(f_ref, y_ref, o_ref, *, rows_per_block):
    j = pl.program_id(1)  # reduction ("arbitrary") axis, innermost

    @pl.when(j == 0)
    def _():
        o_ref[...] = jnp.zeros_like(o_ref)

    f = f_ref[...].astype(jnp.float32)
    y = y_ref[...].astype(jnp.float32)
    num = jnp.abs(f - y)
    den = jnp.abs(f) + jnp.abs(y)
    raw = num / den
    # divide_no_nan: 0/0 -> NaN and x/0 -> +inf must both become 0.  Since
    # num >= 0 and den >= 0 the quotient is never -inf, so a single compare
    # against +inf covers both cases (NaN < inf is False -> selects 0).
    ratio = jnp.where(raw < jnp.inf, raw, jnp.float32(0.0))
    # Fold the (rows_per_block, lane) tile onto the resident (8, lane) output
    # accumulator with pure VPU adds (no per-step cross-lane reduce, no SMEM
    # scalar read-modify-write chain).
    o_ref[...] += ratio.reshape(rows_per_block // 8, 8, ratio.shape[-1]).sum(axis=0)


def smape_loss(forecast: jax.Array, target: jax.Array, *,
               lane: int = _LANE, block_bytes: int = 2 << 20) -> jax.Array:
    """sMAPE loss over a (batch, time) pair of arrays. Returns a scalar float32."""
    assert forecast.shape == target.shape and forecast.ndim == 2
    n = forecast.size
    itemsize = jnp.dtype(forecast.dtype).itemsize

    rows = pl.cdiv(n, lane)
    # Per-input block sized so 2 inputs x 2 pipeline buffers stay well under the
    # default scoped-VMEM limit on every TPU generation (v5e 16 MiB ... v7x 32 MiB).
    max_rows_per_block = max(8, (block_bytes // (lane * itemsize)) // 8 * 8)
    rows_per_block = min(max_rows_per_block, pl.cdiv(rows, 8) * 8)

    n_blocks = pl.cdiv(rows, rows_per_block)
    # Shard the reduction across the two TensorCores (v7x) when there is work
    # for both; on single-core chips the leading axis simply iterates.
    num_cores = 2 if n_blocks >= 2 else 1
    blocks_per_core = pl.cdiv(n_blocks, num_cores)
    padded_rows = num_cores * blocks_per_core * rows_per_block

    # Zero padding is exact: num = den = 0 there, so the ratio contributes 0.
    pad = padded_rows * lane - n
    f = jnp.pad(forecast.reshape(-1), (0, pad)).reshape(padded_rows, lane)
    y = jnp.pad(target.reshape(-1), (0, pad)).reshape(padded_rows, lane)

    kernel = functools.partial(_smape_kernel, rows_per_block=rows_per_block)

    partials = pl.pallas_call(
        kernel,
        out_shape=jax.ShapeDtypeStruct((num_cores * 8, lane), jnp.float32),
        grid_spec=pltpu.PrefetchScalarGridSpec(
            num_scalar_prefetch=0,
            grid=(num_cores, blocks_per_core),
            in_specs=[
                pl.BlockSpec((rows_per_block, lane),
                             lambda c, j: (c * blocks_per_core + j, 0)),
                pl.BlockSpec((rows_per_block, lane),
                             lambda c, j: (c * blocks_per_core + j, 0)),
            ],
            # Constant block index along the reduction axis -> output block
            # stays resident in VMEM and acts as the per-core accumulator.
            out_specs=pl.BlockSpec((8, lane), lambda c, j: (c, 0)),
        ),
        compiler_params=pltpu.CompilerParams(
            dimension_semantics=("parallel", "arbitrary")),
    )(f, y)

    # Final cross-lane reduce + scale: one tiny XLA op on a (num_cores*8, lane)
    # array; mean divisor is the *unpadded* element count.
    return 200.0 * jnp.sum(partials) / n


def smape_loss_ref(forecast, target):
    f = forecast.astype(jnp.float32)
    y = target.astype(jnp.float32)
    num = jnp.abs(f - y)
    den = jnp.abs(f) + jnp.abs(y)
    ratio = jnp.where(den == 0.0, 0.0, num / jnp.where(den == 0.0, 1.0, den))
    return 200.0 * jnp.mean(ratio)


if __name__ == "__main__":
    key = jax.random.PRNGKey(0)
    kf, kt = jax.random.split(key)

    # Small shape matching the module spec (batch, time).
    B, T = 8, 256
    forecast = jax.random.normal(kf, (B, T), dtype=jnp.float32)
    target = jax.random.normal(kt, (B, T), dtype=jnp.float32)
    # Exercise the divide_no_nan (0/0) path: zero out a block in both tensors.
    forecast = forecast.at[:, :16].set(0.0)
    target = target.at[:, :16].set(0.0)

    loss = jax.block_until_ready(smape_loss(forecast, target))
    ref = jax.block_until_ready(smape_loss_ref(forecast, target))
    assert jnp.isfinite(loss), "loss is not finite"
    assert abs(float(loss) - float(ref)) < 1e-3 * max(1.0, abs(float(ref))), (
        float(loss), float(ref))

    # Exercise the multi-block / two-core path with a modest shape and a small
    # per-block budget (several grid steps; both TensorCores on v7x).
    B2, T2 = 8, 8192
    f2 = jax.random.normal(jax.random.PRNGKey(1), (B2, T2), dtype=jnp.float32)
    y2 = jax.random.normal(jax.random.PRNGKey(2), (B2, T2), dtype=jnp.float32)
    loss2 = jax.block_until_ready(smape_loss(f2, y2, block_bytes=64 << 10))
    ref2 = jax.block_until_ready(smape_loss_ref(f2, y2))
    assert abs(float(loss2) - float(ref2)) < 1e-3 * max(1.0, abs(float(ref2))), (
        float(loss2), float(ref2))

    print("KERNEL_OK")
</pallas_src>

<mosaic_0001>
module attributes {stable_mosaic.version = 11 : i64} {
  func.func @_smape_kernel(%arg0: i32, %arg1: i32, %arg2: memref<8x512xf32, #tpu.memory_space<vmem>>, %arg3: memref<8x512xf32, #tpu.memory_space<vmem>>, %arg4: memref<8x512xf32, #tpu.memory_space<vmem>>) attributes {dimension_semantics = [#tpu.dimension_semantics<parallel>, #tpu.dimension_semantics<arbitrary>], iteration_bounds = array<i64: 1, 1>, scalar_prefetch = 0 : i64, scratch_operands = 0 : i64, tpu.core_type = #tpu.core_type<tc>, window_params = [{transform_indices = @transform_0, window_bounds = array<i64: 8, 512>}, {transform_indices = @transform_1, window_bounds = array<i64: 8, 512>}, {transform_indices = @transform_2, window_bounds = array<i64: 8, 512>}]} {
    %c0_i32 = arith.constant 0 : i32
    %0 = arith.cmpi eq, %arg1, %c0_i32 : i32
    %1 = arith.extui %0 : i1 to i32
    %c0_i32_0 = arith.constant 0 : i32
    %2 = arith.cmpi ne, %1, %c0_i32_0 : i32
    scf.if %2 {
      %cst_10 = arith.constant 0.000000e+00 : f32
      %20 = vector.broadcast %cst_10 : f32 to vector<8x512xf32>
      %c0_11 = arith.constant 0 : index
      %c0_12 = arith.constant 0 : index
      %21 = vector.load %arg4[%c0_11, %c0_12] : memref<8x512xf32, #tpu.memory_space<vmem>>, vector<8x512xf32>
      tpu.vector_store %arg4[%c0_11, %c0_12], %20 {strides = array<i32>} : memref<8x512xf32, #tpu.memory_space<vmem>>, vector<8x512xf32>,
    } else {
    }
    %c0 = arith.constant 0 : index
    %c0_1 = arith.constant 0 : index
    %3 = vector.load %arg2[%c0, %c0_1] : memref<8x512xf32, #tpu.memory_space<vmem>>, vector<8x512xf32>
    %c0_2 = arith.constant 0 : index
    %c0_3 = arith.constant 0 : index
    %4 = vector.load %arg3[%c0_2, %c0_3] : memref<8x512xf32, #tpu.memory_space<vmem>>, vector<8x512xf32>
    %5 = arith.subf %3, %4 : vector<8x512xf32>
    %6 = math.absf %5 : vector<8x512xf32>
    %7 = math.absf %3 : vector<8x512xf32>
    %8 = math.absf %4 : vector<8x512xf32>
    %9 = arith.addf %7, %8 : vector<8x512xf32>
    %10 = arith.divf %6, %9 : vector<8x512xf32>
    %cst = arith.constant 0x7F800000 : f32
    %11 = vector.broadcast %cst : f32 to vector<8x512xf32>
    %12 = arith.cmpf olt, %10, %11 : vector<8x512xf32>
    %cst_4 = arith.constant 0.000000e+00 : f32
    %13 = vector.broadcast %cst_4 : f32 to vector<8x512xf32>
    %14 = arith.select %12, %10, %13 : vector<8x512xi1>, vector<8x512xf32>
    %c0_5 = arith.constant 0 : index
    %c0_6 = arith.constant 0 : index
    %15 = vector.load %arg4[%c0_5, %c0_6] : memref<8x512xf32, #tpu.memory_space<vmem>>, vector<8x512xf32>
    %16 = vector.shape_cast %14 : vector<8x512xf32> to vector<1x8x512xf32>
    %cst_7 = arith.constant dense<0.000000e+00> : vector<8x512xf32>
    %17 = vector.multi_reduction <add>, %16, %cst_7 [0] : vector<1x8x512xf32> to vector<8x512xf32>
    %18 = arith.addf %15, %17 : vector<8x512xf32>
    %c0_8 = arith.constant 0 : index
    %c0_9 = arith.constant 0 : index
    %19 = vector.load %arg4[%c0_8, %c0_9] : memref<8x512xf32, #tpu.memory_space<vmem>>, vector<8x512xf32>
    tpu.vector_store %arg4[%c0_8, %c0_9], %18 {strides = array<i32>} : memref<8x512xf32, #tpu.memory_space<vmem>>, vector<8x512xf32>,
    return
  }
  func.func @transform_0(%arg0: i32, %arg1: i32) -> (i32, i32) {
    %c1_i32 = arith.constant 1 : i32
    %0 = arith.muli %arg0, %c1_i32 : i32
    %1 = arith.addi %0, %arg1 : i32
    %c0_i32 = arith.constant 0 : i32
    %c0_i32_0 = arith.constant 0 : i32
    return %1, %c0_i32 : i32, i32
  }
  func.func @transform_1(%arg0: i32, %arg1: i32) -> (i32, i32) {
    %c1_i32 = arith.constant 1 : i32
    %0 = arith.muli %arg0, %c1_i32 : i32
    %1 = arith.addi %0, %arg1 : i32
    %c0_i32 = arith.constant 0 : i32
    %c0_i32_0 = arith.constant 0 : i32
    return %1, %c0_i32 : i32, i32
  }
  func.func @transform_2(%arg0: i32, %arg1: i32) -> (i32, i32) {
    %c0_i32 = arith.constant 0 : i32
    %c0_i32_0 = arith.constant 0 : i32
    return %arg0, %c0_i32 : i32, i32
  }
}

</mosaic_0001>

<llo_original>
// kernel: tpu_custom_call.1
$region0: #{tpu_custom_call.1}
  #allocation0 [shape = 'u32[]', space=smem, size = 0x4, offset = 0x4, fixed_abs, tag = 'smem constant byte address 0x4 - core index']
  #allocation1 [shape = 'u32[72,128]{1,0:T(1,128)}', space=vmem, size = 0x9000, scoped, tag = 'internal scratch']
  %s0 = inlined_call_operand.hbm [shape: f32[8,512], index: 0, kind: input, shape index: {}]
  %s1 = inlined_call_operand.hbm [shape: f32[8,512], index: 1, kind: input, shape index: {}]
  %s2 = inlined_call_operand.hbm [shape: f32[8,512], index: 2, kind: output, shape index: {}]
  %s3 = sld [smem:[#allocation0]]
  $region30: #{tpu_custom_call.1} parent=0
    _
  %s5 = ssub.s32 1, %s3
  %s6 = scalar_select 0, %s5, %s3
  $region1: #{tpu_custom_call.1} parent=0
    #allocation2 [shape = 'u8[16384]{0}', space=vmem, size = 0x4000, scoped, tag = 'input window, operand 0, single buffered']
    #allocation3 [shape = 's32[1]{0}', space=sflag, size = 0x4, scoped, tag = 'scoped memory for tpu_custom_call.1']
    #allocation4 [shape = 's32[1]{0}', space=sflag, size = 0x4, scoped, tag = 'scoped memory for tpu_custom_call.1']
    #allocation5 [shape = 'u8[16384]{0}', space=vmem, size = 0x4000, scoped, tag = 'input window, operand 1, single buffered']
    #allocation6 [shape = 's32[1]{0}', space=sflag, size = 0x4, scoped, tag = 'scoped memory for tpu_custom_call.1']
    #allocation7 [shape = 'u8[16384]{0}', space=vmem, size = 0x4000, scoped, tag = 'output window, operand 0, single buffered']
    %7 = vsyncpa [#allocation3], 0
    %8 = vsyncpa [#allocation6], 0
    %9 = vsyncpa [#allocation4], 0
    // Predicated region
    $region2: #{tpu_custom_call.1} parent=1 // pred_check
      _
    $region3: #{tpu_custom_call.1} parent=1 // pred_check_branch
      %11 = sbr.rel (0) target = $region5
    $region4: #{tpu_custom_call.1} parent=1 // pred_region
      %s12 = sadd.s32 0, 0
      %14 = vsyncadd [#allocation3], 0
      %s15 = smul.addr %s12, 4
      %s16 = smul.addr %s15, 8
      %s17 = scalar_lea.hbm %s0, %s16
      %s19 = sshll.u32 %s17, 4
      %s20 = int_to_ptr.hbm [resolvable:$true] %s19
      %s21 = sshll.u32 [#allocation2], 4
      %s22 = int_to_ptr.vmem [resolvable:$true] %s21
      %24 = dma.hbm_to_vmem [thread:$0]  %s20, 512, %s22, [#allocation3]
    $region5: #{tpu_custom_call.1} parent=1 // pred_fallthru
      _
    // Predicated region
    $region6: #{tpu_custom_call.1} parent=1 // pred_check
      _
    $region7: #{tpu_custom_call.1} parent=1 // pred_check_branch
      %26 = sbr.rel (0) target = $region9
    $region8: #{tpu_custom_call.1} parent=1 // pred_region
      %s27 = sadd.s32 0, 0
      %29 = vsyncadd [#allocation6], 0
      %s30 = smul.addr %s27, 4
      %s31 = smul.addr %s30, 8
      %s32 = scalar_lea.hbm %s1, %s31
      %s34 = sshll.u32 %s32, 4
      %s35 = int_to_ptr.hbm [resolvable:$true] %s34
      %s36 = sshll.u32 [#allocation5], 4
      %s37 = int_to_ptr.vmem [resolvable:$true] %s36
      %39 = dma.hbm_to_vmem [thread:$0]  %s35, 512, %s37, [#allocation6]
    $region9: #{tpu_custom_call.1} parent=1 // pred_fallthru
      _
    // Predicated region
    $region10: #{tpu_custom_call.1} parent=1 // pred_check
      _
    $region11: #{tpu_custom_call.1} parent=1 // pred_check_branch
      %41 = sbr.rel (0) target = $region13
    $region12: #{tpu_custom_call.1} parent=1 // pred_region
      %43 = dma.done [#allocation3], 512
    $region13: #{tpu_custom_call.1} parent=1 // pred_fallthru
      _
    // Predicated region
    $region14: #{tpu_custom_call.1} parent=1 // pred_check
      _
    $region15: #{tpu_custom_call.1} parent=1 // pred_check_branch
      %45 = sbr.rel (0) target = $region17
    $region16: #{tpu_custom_call.1} parent=1 // pred_region
      %47 = dma.done [#allocation6], 512
    $region17: #{tpu_custom_call.1} parent=1 // pred_fallthru
      _
    %s48 = sadd.s32 0, 0
    %s49 = sadd.s32 0, 0
    %p50 = scmp.eq.s32.totalorder 0, 0
    // Predicated region
    $region18: #{tpu_custom_call.1} parent=1 // pred_check
      %p51 = pneg %p50
    $region19: #{tpu_custom_call.1} parent=1 // pred_check_branch
      %53 = sbr.rel (%p51) target = $region21
    $region20: #{tpu_custom_call.1} parent=1 // pred_region
      %54 = vst [vmem:[#allocation7] sm:$0xff] 0.0
      %55 = vst [vmem:[#allocation7 + $0x8] sm:$0xff] 0.0
      %56 = vst [vmem:[#allocation7 + $0x10] sm:$0xff] 0.0
      %57 = vst [vmem:[#allocation7 + $0x18] sm:$0xff] 0.0
    $region21: #{tpu_custom_call.1} parent=1 // pred_fallthru
      _
    %v58 = vld [vmem:[#allocation2] sm:$0xff]
    %v59 = vld [vmem:[#allocation2 + $0x8] sm:$0xff]
    %v60 = vld [vmem:[#allocation2 + $0x10] sm:$0xff]
    %v61 = vld [vmem:[#allocation2 + $0x18] sm:$0xff]
    %v62 = vld [vmem:[#allocation5] sm:$0xff]
    %v63 = vld [vmem:[#allocation5 + $0x8] sm:$0xff]
    %v64 = vld [vmem:[#allocation5 + $0x10] sm:$0xff]
    %v65 = vld [vmem:[#allocation5 + $0x18] sm:$0xff]
    %v66 = vsub.f32 %v58, %v62
    %v67 = vsub.f32 %v59, %v63
    %v68 = vsub.f32 %v60, %v64
    %v69 = vsub.f32 %v61, %v65
    %v70 = vand.u32 2147483647, %v66
    %v71 = vand.u32 2147483647, %v67
    %v72 = vand.u32 2147483647, %v68
    %v73 = vand.u32 2147483647, %v69
    %v74 = vand.u32 2147483647, %v58
    %v75 = vand.u32 2147483647, %v59
    %v76 = vand.u32 2147483647, %v60
    %v77 = vand.u32 2147483647, %v61
    %v78 = vand.u32 2147483647, %v62
    %v79 = vand.u32 2147483647, %v63
    %v80 = vand.u32 2147483647, %v64
    %v81 = vand.u32 2147483647, %v65
    %v82 = vadd.f32 %v74, %v78
    %v83 = vadd.f32 %v75, %v79
    %v84 = vadd.f32 %v76, %v80
    %v85 = vadd.f32 %v77, %v81
    %v86 = vrcp.pop %v82
    %v87 = vmul.f32 %v82, %v86
    %v88 = vsub.f32 1.0, %v87
    %v89 = vmul.f32 %v86, %v88
    %v90 = vadd.f32 %v86, %v89
    %vm91 = vweird.f32 %v82
    %vm92 = vweird.f32 %v86
    %vm93 = vmor %vm91, %vm92
    %v94 = vsel %vm93, %v86, %v90
    %v95 = vand.u32 2147483647, %v82
    %vm96 = vcmp.eq.f32.partialorder %v95, 8.507059e+37
    %v97 = vand.u32 %v82, 2147483648
    %v98 = vor.u32 1.1754944e-38, %v97
    %v99 = vsel %vm96, %v98, %v94
    %v100 = vmul.f32 %v70, %v99
    %v101 = vrcp.pop %v83
    %v102 = vmul.f32 %v83, %v101
    %v103 = vsub.f32 1.0, %v102
    %v104 = vmul.f32 %v101, %v103
    %v105 = vadd.f32 %v101, %v104
    %vm106 = vweird.f32 %v83
    %vm107 = vweird.f32 %v101
    %vm108 = vmor %vm106, %vm107
    %v109 = vsel %vm108, %v101, %v105
    %v110 = vand.u32 2147483647, %v83
    %vm111 = vcmp.eq.f32.partialorder %v110, 8.507059e+37
    %v112 = vand.u32 %v83, 2147483648
    %v113 = vor.u32 1.1754944e-38, %v112
    %v114 = vsel %vm111, %v113, %v109
    %v115 = vmul.f32 %v71, %v114
    %v116 = vrcp.pop %v84
    %v117 = vmul.f32 %v84, %v116
    %v118 = vsub.f32 1.0, %v117
    %v119 = vmul.f32 %v116, %v118
    %v120 = vadd.f32 %v116, %v119
    %vm121 = vweird.f32 %v84
    %vm122 = vweird.f32 %v116
    %vm123 = vmor %vm121, %vm122
    %v124 = vsel %vm123, %v116, %v120
    %v125 = vand.u32 2147483647, %v84
    %vm126 = vcmp.eq.f32.partialorder %v125, 8.507059e+37
    %v127 = vand.u32 %v84, 2147483648
    %v128 = vor.u32 1.1754944e-38, %v127
    %v129 = vsel %vm126, %v128, %v124
    %v130 = vmul.f32 %v72, %v129
    %v131 = vrcp.pop %v85
    %v132 = vmul.f32 %v85, %v131
    %v133 = vsub.f32 1.0, %v132
    %v134 = vmul.f32 %v131, %v133
    %v135 = vadd.f32 %v131, %v134
    %vm136 = vweird.f32 %v85
    %vm137 = vweird.f32 %v131
    %vm138 = vmor %vm136, %vm137
    %v139 = vsel %vm138, %v131, %v135
    %v140 = vand.u32 2147483647, %v85
    %vm141 = vcmp.eq.f32.partialorder %v140, 8.507059e+37
    %v142 = vand.u32 %v85, 2147483648
    %v143 = vor.u32 1.1754944e-38, %v142
    %v144 = vsel %vm141, %v143, %v139
    %v145 = vmul.f32 %v73, %v144
    %vm146 = vcmp.lt.f32.partialorder %v100, inf
    %vm147 = vcmp.lt.f32.partialorder %v115, inf
    %vm148 = vcmp.lt.f32.partialorder %v130, inf
    %vm149 = vcmp.lt.f32.partialorder %v145, inf
    %v150 = vsel %vm146, %v100, 0.0
    %v151 = vsel %vm147, %v115, 0.0
    %v152 = vsel %vm148, %v130, 0.0
    %v153 = vsel %vm149, %v145, 0.0
    %v154 = vld [vmem:[#allocation7] sm:$0xff]
    %v155 = vld [vmem:[#allocation7 + $0x8] sm:$0xff]
    %v156 = vld [vmem:[#allocation7 + $0x10] sm:$0xff]
    %v157 = vld [vmem:[#allocation7 + $0x18] sm:$0xff]
    %v158 = vadd.f32 %v150, 0.0
    %v159 = vadd.f32 %v151, 0.0
    %v160 = vadd.f32 %v152, 0.0
    %v161 = vadd.f32 %v153, 0.0
    %v162 = vadd.f32 %v154, %v158
    %v163 = vadd.f32 %v155, %v159
    %v164 = vadd.f32 %v156, %v160
    %v165 = vadd.f32 %v157, %v161
    %166 = vst [vmem:[#allocation7] sm:$0xff] %v162
    %167 = vst [vmem:[#allocation7 + $0x8] sm:$0xff] %v163
    %168 = vst [vmem:[#allocation7 + $0x10] sm:$0xff] %v164
    %169 = vst [vmem:[#allocation7 + $0x18] sm:$0xff] %v165
    // Predicated region
    $region22: #{tpu_custom_call.1} parent=1 // pred_check
      _
    $region23: #{tpu_custom_call.1} parent=1 // pred_check_branch
      %171 = sbr.rel (0) target = $region25
    $region24: #{tpu_custom_call.1} parent=1 // pred_region
      %173 = vsyncadd [#allocation4], 0
      %s175 = sshll.u32 [#allocation7], 4
      %s176 = int_to_ptr.vmem [resolvable:$true] %s175
      %s177 = sshll.u32 %s2, 4
      %s178 = int_to_ptr.hbm [resolvable:$true] %s177
      %180 = dma.vmem_to_hbm [thread:$0]  %s176, 512, %s178, [#allocation4]
    $region25: #{tpu_custom_call.1} parent=1 // pred_fallthru
      _
    // Predicated region
    $region26: #{tpu_custom_call.1} parent=1 // pred_check
      _
    $region27: #{tpu_custom_call.1} parent=1 // pred_check_branch
      %182 = sbr.rel (0) target = $region29
    $region28: #{tpu_custom_call.1} parent=1 // pred_region
      %184 = dma.done [#allocation4], 512
    $region29: #{tpu_custom_call.1} parent=1 // pred_fallthru
      _
    %185 = vsyncpa [#allocation3], 1
    %186 = vsyncpa [#allocation6], 1
    %187 = vsyncpa [#allocation4], 1

</llo_original>
